<compile_context>
chip_gen: v7x
topology: tpu7x:2x2x1
jax: 0.10.0
libtpu: 0.0.40
codegen_flags: <defaults>
</compile_context>

<pallas_src>
import functools

import jax
import jax.numpy as jnp
from jax.experimental import pallas as pl
from jax.experimental.pallas import tpu as pltpu

_PAIRWISE_EPS = 1e-6  # matches torch.nn.functional.pairwise_distance default eps

# Double-buffered input budget: 3 inputs x 2 buffers x TB x D x itemsize <= this.
_INPUT_VMEM_BUDGET = 24 * 1024 * 1024
_VMEM_LIMIT_BYTES = 48 * 1024 * 1024  # explicit scoped VMEM limit (headroom on all gens)


def _triplet_loss_kernel(a_ref, p_ref, n_ref, o_ref, acc_ref, *,
                         margin, batch, block_rows):
    """One grid step: partial hinge-loss sum over a (block_rows, D) row tile."""
    step = pl.program_id(0)

    @pl.when(step == 0)
    def _():
        acc_ref[0, 0] = jnp.float32(0.0)

    a = a_ref[...].astype(jnp.float32)
    p = p_ref[...].astype(jnp.float32)
    n = n_ref[...].astype(jnp.float32)

    # F.pairwise_distance(x, y, p=2): ||x - y + eps||_2 along the last dim.
    dp = a - p + _PAIRWISE_EPS
    dn = a - n + _PAIRWISE_EPS
    pos_dist = jnp.sqrt(jnp.sum(dp * dp, axis=-1, keepdims=True))  # (TB, 1)
    neg_dist = jnp.sqrt(jnp.sum(dn * dn, axis=-1, keepdims=True))  # (TB, 1)

    hinge = jnp.maximum(pos_dist - neg_dist + margin, 0.0)         # (TB, 1)

    # Mask rows past the true batch size (last block may be padded with garbage).
    row_ids = step * block_rows + jax.lax.broadcasted_iota(jnp.int32, hinge.shape, 0)
    hinge = jnp.where(row_ids < batch, hinge, 0.0)

    # Accumulate the SUM across grid steps; divide by the true B only once.
    acc_ref[0, 0] += jnp.sum(hinge)

    @pl.when(step == pl.num_programs(0) - 1)
    def _():
        o_ref[0, 0] = acc_ref[0, 0] * (1.0 / batch)


def _choose_block_rows(batch, dim, itemsize):
    tb = _INPUT_VMEM_BUDGET // (3 * 2 * dim * itemsize)
    tb = max(8, (tb // 8) * 8)  # sublane-aligned
    if tb >= batch:
        return batch            # one block covering the whole batch (always legal)
    return tb


def triplet_loss(anchor, positive, negative, margin=1.0, block_rows=None):
    """Computes TripletLoss(margin)(anchor, positive, negative) -> scalar f32."""
    assert anchor.shape == positive.shape == negative.shape
    assert anchor.dtype == positive.dtype == negative.dtype
    B, D = anchor.shape
    itemsize = jnp.dtype(anchor.dtype).itemsize

    if block_rows is None:
        block_rows = _choose_block_rows(B, D, itemsize)
    grid = (pl.cdiv(B, block_rows),)

    kernel = functools.partial(_triplet_loss_kernel, margin=float(margin),
                               batch=B, block_rows=block_rows)
    in_spec = pl.BlockSpec((block_rows, D), lambda i: (i, 0),
                           memory_space=pltpu.VMEM)

    # TODO(synk): for very wide embeddings (D >= ~2048 on v7x's 64 MiB VMEM), add a
    # second ("arbitrary", last) grid axis over D with a (TB, 1) f32 scratch holding
    # the partial squared sums, taking sqrt/hinge only on the last D-step.

    out = pl.pallas_call(
        kernel,
        out_shape=jax.ShapeDtypeStruct((1, 1), jnp.float32),
        grid=grid,
        in_specs=[in_spec, in_spec, in_spec],
        out_specs=pl.BlockSpec(memory_space=pltpu.SMEM),
        scratch_shapes=[pltpu.SMEM((1, 1), jnp.float32)],
        compiler_params=pltpu.CompilerParams(
            # The grid axis carries the SMEM accumulator -> must be "arbitrary".
            dimension_semantics=("arbitrary",),
            vmem_limit_bytes=_VMEM_LIMIT_BYTES),
        cost_estimate=pl.CostEstimate(
            flops=8 * B * D,
            transcendentals=2 * B,
            bytes_accessed=3 * B * D * itemsize + 4),
    )(anchor, positive, negative)
    return out[0, 0]


if __name__ == "__main__":
    key = jax.random.PRNGKey(0)
    k_a, k_p, k_n = jax.random.split(key, 3)

    # Small shapes; B is deliberately not a multiple of 8 to exercise last-block masking.
    B, D = 20, 256
    anchor = jax.random.normal(k_a, (B, D), dtype=jnp.float32)
    positive = jax.random.normal(k_p, (B, D), dtype=jnp.float32)
    negative = jax.random.normal(k_n, (B, D), dtype=jnp.float32)

    def ref_loss(a, p, n, margin):
        a = a.astype(jnp.float32)
        p = p.astype(jnp.float32)
        n = n.astype(jnp.float32)
        pos = jnp.sqrt(jnp.sum((a - p + _PAIRWISE_EPS) ** 2, axis=-1))
        neg = jnp.sqrt(jnp.sum((a - n + _PAIRWISE_EPS) ** 2, axis=-1))
        return jnp.mean(jnp.maximum(pos - neg + margin, 0.0))

    # 1) Default auto-sized tiling (collapses to a single block at this tiny size).
    loss = triplet_loss(anchor, positive, negative, margin=1.0)
    jax.block_until_ready(loss)
    assert jnp.allclose(loss, ref_loss(anchor, positive, negative, 1.0),
                        rtol=1e-5, atol=1e-5), loss

    # 2) Forced small row tile -> 3 grid steps with a partial (masked) last block.
    loss_tiled = triplet_loss(anchor, positive, negative, margin=0.5, block_rows=8)
    jax.block_until_ready(loss_tiled)
    assert jnp.allclose(loss_tiled, ref_loss(anchor, positive, negative, 0.5),
                        rtol=1e-5, atol=1e-5), loss_tiled

    # 3) bf16 inputs (halves HBM traffic); kernel upcasts to f32 internally.
    a16 = anchor.astype(jnp.bfloat16)
    p16 = positive.astype(jnp.bfloat16)
    n16 = negative.astype(jnp.bfloat16)
    loss_bf16 = triplet_loss(a16, p16, n16, margin=1.0, block_rows=8)
    jax.block_until_ready(loss_bf16)
    assert jnp.allclose(loss_bf16, ref_loss(a16, p16, n16, 1.0),
                        rtol=1e-5, atol=1e-5), loss_bf16

    print("KERNEL_OK")
</pallas_src>

<mosaic_0001>
module attributes {stable_mosaic.version = 11 : i64} {
  func.func @_triplet_loss_kernel(%arg0: i32, %arg1: memref<20x256xf32, #tpu.memory_space<vmem>>, %arg2: memref<20x256xf32, #tpu.memory_space<vmem>>, %arg3: memref<20x256xf32, #tpu.memory_space<vmem>>, %arg4: memref<1x1xf32, #tpu.memory_space<smem>>, %arg5: memref<1x1xf32, #tpu.memory_space<smem>>) attributes {dimension_semantics = [#tpu.dimension_semantics<arbitrary>], iteration_bounds = array<i64: 1>, scalar_prefetch = 0 : i64, scratch_operands = 1 : i64, tpu.core_type = #tpu.core_type<tc>, window_params = [{transform_indices = @transform_0, window_bounds = array<i64: 20, 256>}, {transform_indices = @transform_1, window_bounds = array<i64: 20, 256>}, {transform_indices = @transform_2, window_bounds = array<i64: 20, 256>}, {transform_indices = @transform_3, window_bounds = array<i64: 1, 1>}]} {
    %c0_i32 = arith.constant 0 : i32
    %0 = arith.cmpi eq, %arg0, %c0_i32 : i32
    %1 = arith.extui %0 : i1 to i32
    %c0_i32_0 = arith.constant 0 : i32
    %2 = arith.cmpi ne, %1, %c0_i32_0 : i32
    scf.if %2 {
      %cst_20 = arith.constant 0.000000e+00 : f32
      %c0_21 = arith.constant 0 : index
      %c0_22 = arith.constant 0 : index
      %43 = memref.load %arg5[%c0_21, %c0_22] : memref<1x1xf32, #tpu.memory_space<smem>>
      memref.store %cst_20, %arg5[%c0_21, %c0_22] : memref<1x1xf32, #tpu.memory_space<smem>>
    } else {
    }
    %c0 = arith.constant 0 : index
    %c0_1 = arith.constant 0 : index
    %3 = vector.load %arg1[%c0, %c0_1] : memref<20x256xf32, #tpu.memory_space<vmem>>, vector<20x256xf32>
    %c0_2 = arith.constant 0 : index
    %c0_3 = arith.constant 0 : index
    %4 = vector.load %arg2[%c0_2, %c0_3] : memref<20x256xf32, #tpu.memory_space<vmem>>, vector<20x256xf32>
    %c0_4 = arith.constant 0 : index
    %c0_5 = arith.constant 0 : index
    %5 = vector.load %arg3[%c0_4, %c0_5] : memref<20x256xf32, #tpu.memory_space<vmem>>, vector<20x256xf32>
    %6 = arith.subf %3, %4 : vector<20x256xf32>
    %cst = arith.constant 9.99999997E-7 : f32
    %7 = vector.broadcast %cst : f32 to vector<20x256xf32>
    %8 = arith.addf %6, %7 : vector<20x256xf32>
    %9 = arith.subf %3, %5 : vector<20x256xf32>
    %cst_6 = arith.constant 9.99999997E-7 : f32
    %10 = vector.broadcast %cst_6 : f32 to vector<20x256xf32>
    %11 = arith.addf %9, %10 : vector<20x256xf32>
    %12 = arith.mulf %8, %8 : vector<20x256xf32>
    %cst_7 = arith.constant dense<0.000000e+00> : vector<20xf32>
    %13 = vector.multi_reduction <add>, %12, %cst_7 [1] : vector<20x256xf32> to vector<20xf32>
    %14 = vector.shape_cast %13 : vector<20xf32> to vector<20x1xf32>
    %15 = math.sqrt %14 : vector<20x1xf32>
    %16 = arith.mulf %11, %11 : vector<20x256xf32>
    %cst_8 = arith.constant dense<0.000000e+00> : vector<20xf32>
    %17 = vector.multi_reduction <add>, %16, %cst_8 [1] : vector<20x256xf32> to vector<20xf32>
    %18 = vector.shape_cast %17 : vector<20xf32> to vector<20x1xf32>
    %19 = math.sqrt %18 : vector<20x1xf32>
    %20 = arith.subf %15, %19 : vector<20x1xf32>
    %cst_9 = arith.constant 1.000000e+00 : f32
    %21 = vector.broadcast %cst_9 : f32 to vector<20x1xf32>
    %22 = arith.addf %20, %21 : vector<20x1xf32>
    %cst_10 = arith.constant 0.000000e+00 : f32
    %23 = vector.broadcast %cst_10 : f32 to vector<20x1xf32>
    %24 = arith.maximumf %22, %23 : vector<20x1xf32>
    %c20_i32 = arith.constant 20 : i32
    %25 = arith.muli %arg0, %c20_i32 : i32
    %26 = tpu.iota {dimensions = array<i32: 0>} : vector<20x1xi32>
    %27 = vector.broadcast %25 : i32 to vector<20x1xi32>
    %28 = arith.addi %27, %26 : vector<20x1xi32>
    %c20_i32_11 = arith.constant 20 : i32
    %29 = vector.broadcast %c20_i32_11 : i32 to vector<20x1xi32>
    %30 = arith.cmpi slt, %28, %29 : vector<20x1xi32>
    %cst_12 = arith.constant 0.000000e+00 : f32
    %31 = vector.broadcast %cst_12 : f32 to vector<20x1xf32>
    %32 = arith.select %30, %24, %31 : vector<20x1xi1>, vector<20x1xf32>
    %c0_13 = arith.constant 0 : index
    %c0_14 = arith.constant 0 : index
    %33 = memref.load %arg5[%c0_13, %c0_14] : memref<1x1xf32, #tpu.memory_space<smem>>
    %34 = vector.shape_cast %32 : vector<20x1xf32> to vector<1x20x1xf32>
    %cst_15 = arith.constant dense<0.000000e+00> : vector<1xf32>
    %35 = vector.multi_reduction <add>, %34, %cst_15 [1, 2] : vector<1x20x1xf32> to vector<1xf32>
    %36 = vector.shape_cast %35 : vector<1xf32> to vector<1x1x1xf32>
    %37 = vector.extract %36[0, 0, 0] : f32 from vector<1x1x1xf32>
    %38 = arith.addf %33, %37 : f32
    %c0_16 = arith.constant 0 : index
    %c0_17 = arith.constant 0 : index
    %39 = memref.load %arg5[%c0_16, %c0_17] : memref<1x1xf32, #tpu.memory_space<smem>>
    memref.store %38, %arg5[%c0_16, %c0_17] : memref<1x1xf32, #tpu.memory_space<smem>>
    %c0_i32_18 = arith.constant 0 : i32
    %40 = arith.cmpi eq, %arg0, %c0_i32_18 : i32
    %41 = arith.extui %40 : i1 to i32
    %c0_i32_19 = arith.constant 0 : i32
    %42 = arith.cmpi ne, %41, %c0_i32_19 : i32
    scf.if %42 {
      %c0_20 = arith.constant 0 : index
      %c0_21 = arith.constant 0 : index
      %43 = memref.load %arg5[%c0_20, %c0_21] : memref<1x1xf32, #tpu.memory_space<smem>>
      %cst_22 = arith.constant 5.000000e-02 : f32
      %44 = arith.mulf %43, %cst_22 : f32
      %c0_23 = arith.constant 0 : index
      %c0_24 = arith.constant 0 : index
      %45 = memref.load %arg4[%c0_23, %c0_24] : memref<1x1xf32, #tpu.memory_space<smem>>
      memref.store %44, %arg4[%c0_23, %c0_24] : memref<1x1xf32, #tpu.memory_space<smem>>
    } else {
    }
    return
  }
  func.func @transform_0(%arg0: i32) -> (i32, i32) {
    %c0_i32 = arith.constant 0 : i32
    %c0_i32_0 = arith.constant 0 : i32
    return %arg0, %c0_i32 : i32, i32
  }
  func.func @transform_1(%arg0: i32) -> (i32, i32) {
    %c0_i32 = arith.constant 0 : i32
    %c0_i32_0 = arith.constant 0 : i32
    return %arg0, %c0_i32 : i32, i32
  }
  func.func @transform_2(%arg0: i32) -> (i32, i32) {
    %c0_i32 = arith.constant 0 : i32
    %c0_i32_0 = arith.constant 0 : i32
    return %arg0, %c0_i32 : i32, i32
  }
  func.func @transform_3(%arg0: i32) -> (i32, i32) {
    %c0_i32 = arith.constant 0 : i32
    %c0_i32_0 = arith.constant 0 : i32
    %c0_i32_1 = arith.constant 0 : i32
    return %c0_i32, %c0_i32_0 : i32, i32
  }
}

</mosaic_0001>

<llo_original>
// kernel: tpu_custom_call.1
$region0: #{tpu_custom_call.1}
  #allocation0 [shape = 'u32[]', space=smem, size = 0x4, offset = 0x4, fixed_abs, tag = 'smem constant byte address 0x4 - core index']
  #allocation1 [shape = 'u32[144,128]{1,0:T(1,128)}', space=vmem, size = 0x12000, scoped, tag = 'internal scratch']
  #allocation2 [shape = 'f32[1,1]{1,0:T(1,128)}', space=smem, size = 0x200, scoped, tag = 'scratch operand']
  %s0 = inlined_call_operand.hbm [shape: f32[20,256], index: 0, kind: input, shape index: {}]
  %s1 = inlined_call_operand.hbm [shape: f32[20,256], index: 1, kind: input, shape index: {}]
  %s2 = inlined_call_operand.hbm [shape: f32[20,256], index: 2, kind: input, shape index: {}]
  %s3 = inlined_call_operand.hbm [shape: f32[1,1], index: 3, kind: output, shape index: {}]
  %s4 = sld [smem:[#allocation0]]
  $region42: #{tpu_custom_call.1} parent=0
    _
  %s6 = ssub.s32 1, %s4
  %s7 = scalar_select 0, %s6, %s4
  $region1: #{tpu_custom_call.1} parent=0
    #allocation3 [shape = 'u8[24576]{0}', space=vmem, size = 0x6000, scoped, tag = 'input window, operand 0, single buffered']
    #allocation4 [shape = 's32[1]{0}', space=sflag, size = 0x4, scoped, tag = 'scoped memory for tpu_custom_call.1']
    #allocation5 [shape = 's32[1]{0}', space=sflag, size = 0x4, scoped, tag = 'scoped memory for tpu_custom_call.1']
    #allocation6 [shape = 'u8[24576]{0}', space=vmem, size = 0x6000, scoped, tag = 'input window, operand 1, single buffered']
    #allocation7 [shape = 's32[1]{0}', space=sflag, size = 0x4, scoped, tag = 'scoped memory for tpu_custom_call.1']
    #allocation8 [shape = 'u8[24576]{0}', space=vmem, size = 0x6000, scoped, tag = 'input window, operand 2, single buffered']
    #allocation9 [shape = 'u8[512]{0}', space=smem, size = 0x200, scoped, tag = 'output window, operand 0, single buffered']
    %8 = vsyncpa [#allocation4], 0
    %9 = vsyncpa [#allocation7], 0
    %10 = vsyncpa [#allocation5], 0
    // Predicated region
    $region2: #{tpu_custom_call.1} parent=1 // pred_check
      _
    $region3: #{tpu_custom_call.1} parent=1 // pred_check_branch
      %12 = sbr.rel (0) target = $region5
    $region4: #{tpu_custom_call.1} parent=1 // pred_region
      %s14 = ssub.s32 768, 768
      %15 = vsyncadd [#allocation4], %s14
      %s16 = sshll.u32 [#allocation3], 4
      %s17 = int_to_ptr.vmem [resolvable:$true] %s16
      %22 = dma.hbm_to_vmem [thread:$0]  %s0, 768, %s17, [#allocation4], 256, 256, 16
    $region5: #{tpu_custom_call.1} parent=1 // pred_fallthru
      _
    // Predicated region
    $region6: #{tpu_custom_call.1} parent=1 // pred_check
      _
    $region7: #{tpu_custom_call.1} parent=1 // pred_check_branch
      %24 = sbr.rel (0) target = $region9
    $region8: #{tpu_custom_call.1} parent=1 // pred_region
      %s26 = ssub.s32 768, 768
      %27 = vsyncadd [#allocation7], %s26
      %s28 = sshll.u32 [#allocation6], 4
      %s29 = int_to_ptr.vmem [resolvable:$true] %s28
      %34 = dma.hbm_to_vmem [thread:$0]  %s1, 768, %s29, [#allocation7], 256, 256, 16
    $region9: #{tpu_custom_call.1} parent=1 // pred_fallthru
      _
    // Predicated region
    $region10: #{tpu_custom_call.1} parent=1 // pred_check
      _
    $region11: #{tpu_custom_call.1} parent=1 // pred_check_branch
      %36 = sbr.rel (0) target = $region13
    $region12: #{tpu_custom_call.1} parent=1 // pred_region
      %s38 = ssub.s32 768, 768
      %39 = vsyncadd [#allocation7], %s38
      %s40 = sshll.u32 [#allocation8], 4
      %s41 = int_to_ptr.vmem [resolvable:$true] %s40
      %46 = dma.hbm_to_vmem [thread:$0]  %s2, 768, %s41, [#allocation7], 256, 256, 16
    $region13: #{tpu_custom_call.1} parent=1 // pred_fallthru
      _
    // Predicated region
    $region14: #{tpu_custom_call.1} parent=1 // pred_check
      _
    $region15: #{tpu_custom_call.1} parent=1 // pred_check_branch
      %48 = sbr.rel (0) target = $region17
    $region16: #{tpu_custom_call.1} parent=1 // pred_region
      %49 = dma.done [#allocation4], 768
    $region17: #{tpu_custom_call.1} parent=1 // pred_fallthru
      _
    // Predicated region
    $region18: #{tpu_custom_call.1} parent=1 // pred_check
      _
    $region19: #{tpu_custom_call.1} parent=1 // pred_check_branch
      %51 = sbr.rel (0) target = $region21
    $region20: #{tpu_custom_call.1} parent=1 // pred_region
      %52 = dma.done [#allocation7], 768
    $region21: #{tpu_custom_call.1} parent=1 // pred_fallthru
      _
    // Predicated region
    $region22: #{tpu_custom_call.1} parent=1 // pred_check
      _
    $region23: #{tpu_custom_call.1} parent=1 // pred_check_branch
      %54 = sbr.rel (0) target = $region25
    $region24: #{tpu_custom_call.1} parent=1 // pred_region
      %55 = dma.done [#allocation7], 768
    $region25: #{tpu_custom_call.1} parent=1 // pred_fallthru
      _
    %p56 = scmp.eq.s32.totalorder 0, 0
    // Predicated region
    $region26: #{tpu_custom_call.1} parent=1 // pred_check
      %p57 = pneg %p56
    $region27: #{tpu_custom_call.1} parent=1 // pred_check_branch
      %59 = sbr.rel (%p57) target = $region29
    $region28: #{tpu_custom_call.1} parent=1 // pred_region
      %s60 = scalar_lea.smem [#allocation2], 0
      %61 = sst [smem:[%s60]] 0.0
    $region29: #{tpu_custom_call.1} parent=1 // pred_fallthru
      _
    %v62 = vld [vmem:[#allocation3] sm:$0xff]
    %v63 = vld [vmem:[#allocation3 + $0x8] sm:$0xff]
    %v64 = vld [vmem:[#allocation3 + $0x10] sm:$0xff]
    %v65 = vld [vmem:[#allocation3 + $0x18] sm:$0xff]
    %v66 = vld [vmem:[#allocation3 + $0x20] sm:$0xf]
    %v67 = vld [vmem:[#allocation3 + $0x28] sm:$0xf]
    %v68 = vld [vmem:[#allocation6] sm:$0xff]
    %v69 = vld [vmem:[#allocation6 + $0x8] sm:$0xff]
    %v70 = vld [vmem:[#allocation6 + $0x10] sm:$0xff]
    %v71 = vld [vmem:[#allocation6 + $0x18] sm:$0xff]
    %v72 = vld [vmem:[#allocation6 + $0x20] sm:$0xf]
    %v73 = vld [vmem:[#allocation6 + $0x28] sm:$0xf]
    %v74 = vld [vmem:[#allocation8] sm:$0xff]
    %v75 = vld [vmem:[#allocation8 + $0x8] sm:$0xff]
    %v76 = vld [vmem:[#allocation8 + $0x10] sm:$0xff]
    %v77 = vld [vmem:[#allocation8 + $0x18] sm:$0xff]
    %v78 = vld [vmem:[#allocation8 + $0x20] sm:$0xf]
    %v79 = vld [vmem:[#allocation8 + $0x28] sm:$0xf]
    %v80 = vsub.f32 %v62, %v68
    %v81 = vsub.f32 %v63, %v69
    %v82 = vsub.f32 %v64, %v70
    %v83 = vsub.f32 %v65, %v71
    %v84 = vsub.f32 %v66, %v72
    %v85 = vsub.f32 %v67, %v73
    %v86 = vadd.f32 %v80, 1e-06
    %v87 = vadd.f32 %v81, 1e-06
    %v88 = vadd.f32 %v82, 1e-06
    %v89 = vadd.f32 %v83, 1e-06
    %v90 = vadd.f32 %v84, 1e-06
    %v91 = vadd.f32 %v85, 1e-06
    %v92 = vsub.f32 %v62, %v74
    %v93 = vsub.f32 %v63, %v75
    %v94 = vsub.f32 %v64, %v76
    %v95 = vsub.f32 %v65, %v77
    %v96 = vsub.f32 %v66, %v78
    %v97 = vsub.f32 %v67, %v79
    %v98 = vadd.f32 %v92, 1e-06
    %v99 = vadd.f32 %v93, 1e-06
    %v100 = vadd.f32 %v94, 1e-06
    %v101 = vadd.f32 %v95, 1e-06
    %v102 = vadd.f32 %v96, 1e-06
    %v103 = vadd.f32 %v97, 1e-06
    %v104 = vmul.f32 %v86, %v86
    %v105 = vmul.f32 %v87, %v87
    %v106 = vmul.f32 %v88, %v88
    %v107 = vmul.f32 %v89, %v89
    %v108 = vmul.f32 %v90, %v90
    %v109 = vmul.f32 %v91, %v91
    %v110 = vadd.f32 %v104, %v105
    %111 = vadd.xlane.f32.xlu0 %v110
    %v112 = vpop.xlane.xlu0 %111
    %v113 = vadd.f32 %v106, %v107
    %114 = vadd.xlane.f32.xlu0 %v113
    %v115 = vpop.xlane.xlu0 %114
    %vm116 = vcmask 1043456
    %v117 = vsel %vm116, %v108, 0.0
    %v118 = vsel %vm116, %v109, 0.0
    %v119 = vadd.f32 %v117, %v118
    %120 = vadd.xlane.f32.xlu0 %v119
    %v121 = vpop.xlane.xlu0 %120
    %v122 = vrsqrt.pop %v112
    %v123 = vmul.f32 %v112, %v122
    %vm124 = vcmp.eq.f32.partialorder %v112, inf
    %v125 = vsel %vm124, %v112, %v123
    %vm126 = vcmp.eq.f32.partialorder %v112, 0.0
    %v127 = vand.u32 %v112, 2147483648
    %v128 = vsel %vm126, %v127, %v125
    %v129 = vrsqrt.pop %v115
    %v130 = vmul.f32 %v115, %v129
    %vm131 = vcmp.eq.f32.partialorder %v115, inf
    %v132 = vsel %vm131, %v115, %v130
    %vm133 = vcmp.eq.f32.partialorder %v115, 0.0
    %v134 = vand.u32 %v115, 2147483648
    %v135 = vsel %vm133, %v134, %v132
    %v136 = vrsqrt.pop %v121
    %v137 = vmul.f32 %v121, %v136
    %vm138 = vcmp.eq.f32.partialorder %v121, inf
    %v139 = vsel %vm138, %v121, %v137
    %vm140 = vcmp.eq.f32.partialorder %v121, 0.0
    %v141 = vand.u32 %v121, 2147483648
    %v142 = vsel %vm140, %v141, %v139
    %v143 = vmul.f32 %v98, %v98
    %v144 = vmul.f32 %v99, %v99
    %v145 = vmul.f32 %v100, %v100
    %v146 = vmul.f32 %v101, %v101
    %v147 = vmul.f32 %v102, %v102
    %v148 = vmul.f32 %v103, %v103
    %v149 = vadd.f32 %v143, %v144
    %150 = vadd.xlane.f32.xlu0 %v149
    %v151 = vpop.xlane.xlu0 %150
    %v152 = vadd.f32 %v145, %v146
    %153 = vadd.xlane.f32.xlu0 %v152
    %v154 = vpop.xlane.xlu0 %153
    %v155 = vsel %vm116, %v147, 0.0
    %v156 = vsel %vm116, %v148, 0.0
    %v157 = vadd.f32 %v155, %v156
    %158 = vadd.xlane.f32.xlu0 %v157
    %v159 = vpop.xlane.xlu0 %158
    %v160 = vrsqrt.pop %v151
    %v161 = vmul.f32 %v151, %v160
    %vm162 = vcmp.eq.f32.partialorder %v151, inf
    %v163 = vsel %vm162, %v151, %v161
    %vm164 = vcmp.eq.f32.partialorder %v151, 0.0
    %v165 = vand.u32 %v151, 2147483648
    %v166 = vsel %vm164, %v165, %v163
    %v167 = vrsqrt.pop %v154
    %v168 = vmul.f32 %v154, %v167
    %vm169 = vcmp.eq.f32.partialorder %v154, inf
    %v170 = vsel %vm169, %v154, %v168
    %vm171 = vcmp.eq.f32.partialorder %v154, 0.0
    %v172 = vand.u32 %v154, 2147483648
    %v173 = vsel %vm171, %v172, %v170
    %v174 = vrsqrt.pop %v159
    %v175 = vmul.f32 %v159, %v174
    %vm176 = vcmp.eq.f32.partialorder %v159, inf
    %v177 = vsel %vm176, %v159, %v175
    %vm178 = vcmp.eq.f32.partialorder %v159, 0.0
    %v179 = vand.u32 %v159, 2147483648
    %v180 = vsel %vm178, %v179, %v177
    %v181 = vsub.f32 %v128, %v166
    %v182 = vsub.f32 %v135, %v173
    %v183 = vsub.f32 %v142, %v180
    %v184 = vadd.f32 %v181, 1.0
    %v185 = vadd.f32 %v182, 1.0
    %v186 = vadd.f32 %v183, 1.0
    %v187 = vmax.f32 %v184, 0.0
    %v188 = vmax.f32 %v185, 0.0
    %v189 = vmax.f32 %v186, 0.0
    %s190 = smul.u32 0, 20
    %v191 = vlaneseq
    %v192 = vshrl.u32 %v191, 7
    %v193 = vadd.s32 %v192, 8
    %v194 = vadd.s32 %v192, 16
    %v195 = vstv %s190
    %v196 = vadd.s32 %v195, %v192
    %v197 = vadd.s32 %v195, %v193
    %v198 = vadd.s32 %v195, %v194
    %vm199 = vcmp.lt.s32.totalorder %v196, 20
    %vm200 = vcmp.lt.s32.totalorder %v197, 20
    %vm201 = vcmp.lt.s32.totalorder %v198, 20
    %v202 = vsel %vm199, %v187, 0.0
    %v203 = vsel %vm200, %v188, 0.0
    %v204 = vsel %vm201, %v189, 0.0
    %s205 = sld [smem:[#allocation2]]
    %vm206 = vcmask 7168
    %v207 = vsel %vm206, %v202, 0.0
    %v208 = vsel %vm206, %v203, 0.0
    %v209 = vadd.f32 %v207, %v208
    %vm210 = vcmask 3072
    %v211 = vsel %vm210, %v204, 0.0
    %v212 = vadd.f32 %v209, %v211
    %213 = vadd.xlane.f32.xlu0 %v212
    %v214 = vpop.xlane.xlu0 %213
    %v215 = vrot.slane %v214, 4
    %v216 = vadd.f32 %v214, %v215
    %v217 = vrot.slane %v216, 2
    %v218 = vadd.f32 %v216, %v217
    %v219 = vrot.slane %v218, 1
    %v220 = vadd.f32 %v218, %v219
    %s221 = vtos %v220
    %s222 = sadd.f32 %s205, %s221
    %s223 = scalar_lea.smem [#allocation2], 0
    %224 = sst [smem:[%s223]] %s222
    // Predicated region
    $region30: #{tpu_custom_call.1} parent=1 // pred_check
      %p225 = pneg %p56
    $region31: #{tpu_custom_call.1} parent=1 // pred_check_branch
      %227 = sbr.rel (%p225) target = $region33
    $region32: #{tpu_custom_call.1} parent=1 // pred_region
      %s228 = sld [smem:[#allocation2]]
      %s229 = smul.f32 %s228, 0.05
      %s230 = scalar_lea.smem [#allocation9], 0
      %231 = sst [smem:[%s230]] %s229
    $region33: #{tpu_custom_call.1} parent=1 // pred_fallthru
      _
    // Predicated region
    $region34: #{tpu_custom_call.1} parent=1 // pred_check
      _
    $region35: #{tpu_custom_call.1} parent=1 // pred_check_branch
      %233 = sbr.rel (0) target = $region37
    $region36: #{tpu_custom_call.1} parent=1 // pred_region
      %s235 = ssub.s32 16, 16
      %236 = vsyncadd [#allocation5], %s235
      %239 = dma.smem_to_hbm [#allocation9], 16, %s3, [#allocation5]
    $region37: #{tpu_custom_call.1} parent=1 // pred_fallthru
      _
    // Predicated region
    $region38: #{tpu_custom_call.1} parent=1 // pred_check
      _
    $region39: #{tpu_custom_call.1} parent=1 // pred_check_branch
      %241 = sbr.rel (0) target = $region41
    $region40: #{tpu_custom_call.1} parent=1 // pred_region
      %242 = dma.done [#allocation5], 16
    $region41: #{tpu_custom_call.1} parent=1 // pred_fallthru
      _
    %243 = sfence
    %244 = vsyncpa [#allocation4], 1
    %245 = vsyncpa [#allocation7], 1
    %246 = vsyncpa [#allocation5], 1

</llo_original>
